<compile_context>
chip_gen: v7x
topology: tpu7x:2x2x1
jax: 0.10.0
libtpu: 0.0.40
codegen_flags: <defaults>
</compile_context>

<pallas_src>
import functools

import numpy as np
import jax
import jax.numpy as jnp
from jax.experimental import pallas as pl
from jax.experimental.pallas import tpu as pltpu

_THRESHOLD = 0.02    # hardcoded in the reference forward (self.thre ignored there)
_NEG_FILL = -1.0e4   # sentinel logit: sigmoid(_NEG_FILL) == 0 -> mask/rate contribution == 0
_TB = 8              # batch rows per grid step (full 8-sublane output tiles)


# ----------------------------- Pallas kernel ------------------------------- #

def _comm_kernel(conf_ref, mask_ref, cmap_ref, rate_ref, *, n_ch, inv_hw):
    """Branch-free communication-topk for TB batch rows.

    conf_ref: (TB, 2*C, HW) packed logits (rows 0..C-1 = ego, C..2C-1 = neighbor)
    mask_ref: (2, TB, HW)   plane 0 = ego mask (ones), plane 1 = thresholded neighbor mask
    cmap_ref: (2, TB, HW)   plane 0 = ego ori map,     plane 1 = neighbor ori * mask
    rate_ref: (TB, 128)     per-batch communication rate (identical across lanes)
    """
    conf = conf_ref[...].astype(jnp.float32)                      # (TB, 2C, HW)
    # channel max BEFORE sigmoid (monotonic => exact): 1 sigmoid per cav-pixel.
    ego = jax.nn.sigmoid(jnp.max(conf[:, :n_ch, :], axis=1))      # (TB, HW)
    nbr = jax.nn.sigmoid(jnp.max(conf[:, n_ch:, :], axis=1))      # (TB, HW)
    m = ((1.0 - ego) * nbr > _THRESHOLD).astype(jnp.float32)      # (TB, HW)

    mask_ref[0] = jnp.ones_like(m)                                # full (8, HW) stores
    mask_ref[1] = m
    cmap_ref[0] = ego
    cmap_ref[1] = nbr * m
    rate_ref[...] = jnp.broadcast_to(
        jnp.sum(m, axis=-1, keepdims=True) * inv_hw, rate_ref.shape)


# ------------------------------ fused call ---------------------------------- #

@jax.jit
def _comm_fused(conf_packed):
    """conf_packed: (B_pad, 2*C, HW); B_pad a multiple of _TB."""
    B_pad, CC, HW = conf_packed.shape
    n_ch = CC // 2
    kernel = functools.partial(_comm_kernel, n_ch=n_ch, inv_hw=1.0 / HW)
    return pl.pallas_call(
        kernel,
        out_shape=(
            jax.ShapeDtypeStruct((2, B_pad, HW), jnp.float32),   # mask planes
            jax.ShapeDtypeStruct((2, B_pad, HW), jnp.float32),   # cmap planes
            jax.ShapeDtypeStruct((B_pad, 128), jnp.float32),     # per-batch rate
        ),
        grid_spec=pltpu.PrefetchScalarGridSpec(
            num_scalar_prefetch=0,
            grid=(B_pad // _TB,),
            in_specs=[pl.BlockSpec((_TB, CC, HW), lambda g: (g, 0, 0))],
            out_specs=(
                pl.BlockSpec((2, _TB, HW), lambda g: (0, g, 0)),
                pl.BlockSpec((2, _TB, HW), lambda g: (0, g, 0)),
                pl.BlockSpec((_TB, 128), lambda g: (g, 0)),
            ),
        ),
        compiler_params=pltpu.CompilerParams(
            dimension_semantics=("parallel",)),   # v7x: shard batch tiles across TCs
    )(conf_packed)


# ------------------------------ module wrapper ------------------------------ #

class CommunicationTopk:
    def __init__(self, args):
        self.smooth = False
        self.thre = args["thre"]  # stored (unused in reference forward; 0.02 hardcoded)

    def forward(self, batch_confidence_maps, record_len, pairwise_t_matrix, cav_distance):
        B = pairwise_t_matrix.shape[0]
        _, C, H, W = batch_confidence_maps[0].shape
        HW = H * W
        rl = [int(record_len[b]) for b in range(B)]          # host ints, no device sync
        if any(n < 1 or n > 2 for n in rl):
            # reference `.view(N, 1, H, W)` on a 2-row tensor only works for N in {1, 2}
            raise NotImplementedError("CommunicationTopk only supports record_len in {1, 2}")

        dtype = batch_confidence_maps[0].dtype

        # ---- pack input: ONE concat + ONE gather -> (B_pad, 2*C, HW) ------------
        conf_all = jnp.concatenate(
            [jnp.asarray(m).reshape(-1, C, HW) for m in batch_confidence_maps], axis=0)
        sentinel = jnp.full((1, C, HW), _NEG_FILL, dtype)    # sigmoid(sentinel) == 0
        conf_all = jnp.concatenate([conf_all, sentinel], axis=0)
        sent_idx = conf_all.shape[0] - 1

        B_pad = ((B + _TB - 1) // _TB) * _TB
        offs = np.concatenate([[0], np.cumsum(rl)])
        idx = np.full((B_pad, 2), sent_idx, dtype=np.int32)  # padding rows -> sentinel
        for b in range(B):
            idx[b, 0] = offs[b]
            idx[b, 1] = offs[b] + 1 if rl[b] > 1 else sent_idx
        conf_packed = jnp.take(conf_all, jnp.asarray(idx.reshape(-1)), axis=0)
        conf_packed = conf_packed.reshape(B_pad, 2 * C, HW)

        # ---- one fused Pallas call over all batches ------------------------------
        mask_p, cmap_p, rate_p = _comm_fused(conf_packed)

        # ---- outputs --------------------------------------------------------------
        # concatenated masks: ONE gather over (cav, batch)-flattened rows
        mask_flat = mask_p.reshape(2 * B_pad, 1, H, W)       # row index = cav * B_pad + b
        take_idx = np.concatenate(
            [np.arange(rl[b], dtype=np.int64) * B_pad + b for b in range(B)])
        communication_masks = jnp.take(mask_flat, jnp.asarray(take_idx, jnp.int32), axis=0)

        cmap_r = cmap_p.reshape(2, B_pad, 1, H, W)
        batch_communication_maps = [cmap_r[:rl[b], b] for b in range(B)]  # list API from spec

        # sentinel rows (padding + single-cav neighbors) contribute exactly 0
        communication_rates = jnp.sum(rate_p[:, 0]) / B
        return batch_communication_maps, communication_masks, communication_rates


# ------------------------------ reference (JAX) ----------------------------- #

def _ref_forward(batch_confidence_maps, record_len, B):
    masks, rates, cmaps = [], [], []
    for b in range(B):
        N = int(record_len[b])
        conf = batch_confidence_maps[b]
        H, W = conf.shape[-2], conf.shape[-1]
        ori = jnp.max(jax.nn.sigmoid(conf.astype(jnp.float32)), axis=1, keepdims=True)
        if N == 1:
            mask = jnp.ones_like(ori)
            rate = 0.0
        else:
            ones = jnp.ones_like(ori[0])
            zeros = jnp.zeros_like(ori[0])
            request = 1.0 - ori[0]
            confidence = ori[1]
            m = jnp.where(request * confidence > _THRESHOLD, ones, zeros)
            rate = jnp.sum(m[0]) / (H * W)
            mask = jnp.concatenate([ones, m], axis=0).reshape(N, 1, H, W)
        masks.append(mask)
        rates.append(rate)
        cmaps.append(ori * mask)
    return cmaps, jnp.concatenate(masks, axis=0), sum(rates) / B


# ----------------------------------- main ----------------------------------- #

if __name__ == "__main__":
    key = jax.random.PRNGKey(0)
    B, L, C, H, W = 2, 2, 4, 16, 16
    record_len = [2, 1]

    k1, k2, k3 = jax.random.split(key, 3)
    batch_confidence_maps = [
        3.0 * jax.random.normal(k1, (2, C, H, W), jnp.float32),  # batch 0: ego + 1 neighbor
        3.0 * jax.random.normal(k2, (1, C, H, W), jnp.float32),  # batch 1: ego only
    ]
    pairwise_t_matrix = jnp.tile(jnp.eye(4, dtype=jnp.float32), (B, L, L, 1, 1))
    cav_distance = jax.random.uniform(k3, (B, L), dtype=jnp.float32)  # unused by forward

    module = CommunicationTopk({"thre": 0.01})
    maps, masks, rate = module.forward(
        batch_confidence_maps, record_len, pairwise_t_matrix, cav_distance)
    jax.block_until_ready((maps, masks, rate))

    # correctness check against a pure-JAX reference
    ref_maps, ref_masks, ref_rate = _ref_forward(batch_confidence_maps, record_len, B)
    np.testing.assert_allclose(np.asarray(masks), np.asarray(ref_masks), rtol=1e-5, atol=1e-5)
    np.testing.assert_allclose(np.asarray(rate), np.asarray(ref_rate), rtol=1e-5, atol=1e-5)
    for got, want in zip(maps, ref_maps):
        np.testing.assert_allclose(np.asarray(got), np.asarray(want), rtol=1e-5, atol=1e-5)

    print("KERNEL_OK")
</pallas_src>

<mosaic_0001>
module attributes {stable_mosaic.version = 11 : i64} {
  func.func @_comm_kernel(%arg0: i32, %arg1: memref<8x8x256xf32, #tpu.memory_space<vmem>>, %arg2: memref<2x8x256xf32, #tpu.memory_space<vmem>>, %arg3: memref<2x8x256xf32, #tpu.memory_space<vmem>>, %arg4: memref<8x128xf32, #tpu.memory_space<vmem>>) attributes {dimension_semantics = [#tpu.dimension_semantics<parallel>], iteration_bounds = array<i64: 1>, scalar_prefetch = 0 : i64, scratch_operands = 0 : i64, tpu.core_type = #tpu.core_type<tc>, window_params = [{transform_indices = @transform_0, window_bounds = array<i64: 8, 8, 256>}, {transform_indices = @transform_1, window_bounds = array<i64: 2, 8, 256>}, {transform_indices = @transform_2, window_bounds = array<i64: 2, 8, 256>}, {transform_indices = @transform_3, window_bounds = array<i64: 8, 128>}]} {
    %c0 = arith.constant 0 : index
    %c0_0 = arith.constant 0 : index
    %c0_1 = arith.constant 0 : index
    %0 = vector.load %arg1[%c0, %c0_0, %c0_1] : memref<8x8x256xf32, #tpu.memory_space<vmem>>, vector<8x8x256xf32>
    %1 = vector.extract_strided_slice %0 {offsets = [0, 0, 0], sizes = [8, 4, 256], strides = [1, 1, 1]} : vector<8x8x256xf32> to vector<8x4x256xf32>
    %cst = arith.constant dense<0xFF800000> : vector<8x256xf32>
    %2 = vector.multi_reduction <maximumf>, %1, %cst [1] : vector<8x4x256xf32> to vector<8x256xf32>
    %3 = arith.negf %2 : vector<8x256xf32>
    %4 = math.exp %3 : vector<8x256xf32>
    %cst_2 = arith.constant 1.000000e+00 : f32
    %5 = vector.broadcast %cst_2 : f32 to vector<8x256xf32>
    %6 = arith.addf %5, %4 : vector<8x256xf32>
    %7 = arith.divf %5, %6 : vector<8x256xf32>
    %8 = vector.extract_strided_slice %0 {offsets = [0, 4, 0], sizes = [8, 4, 256], strides = [1, 1, 1]} : vector<8x8x256xf32> to vector<8x4x256xf32>
    %cst_3 = arith.constant dense<0xFF800000> : vector<8x256xf32>
    %9 = vector.multi_reduction <maximumf>, %8, %cst_3 [1] : vector<8x4x256xf32> to vector<8x256xf32>
    %10 = arith.negf %9 : vector<8x256xf32>
    %11 = math.exp %10 : vector<8x256xf32>
    %cst_4 = arith.constant 1.000000e+00 : f32
    %12 = vector.broadcast %cst_4 : f32 to vector<8x256xf32>
    %13 = arith.addf %12, %11 : vector<8x256xf32>
    %14 = arith.divf %12, %13 : vector<8x256xf32>
    %cst_5 = arith.constant 1.000000e+00 : f32
    %15 = vector.broadcast %cst_5 : f32 to vector<8x256xf32>
    %16 = arith.subf %15, %7 : vector<8x256xf32>
    %17 = arith.mulf %16, %14 : vector<8x256xf32>
    %cst_6 = arith.constant 2.000000e-02 : f32
    %18 = vector.broadcast %cst_6 : f32 to vector<8x256xf32>
    %19 = arith.cmpf ogt, %17, %18 : vector<8x256xf32>
    %20 = arith.extui %19 : vector<8x256xi1> to vector<8x256xi32>
    %21 = arith.sitofp %20 : vector<8x256xi32> to vector<8x256xf32>
    %cst_7 = arith.constant 1.000000e+00 : f32
    %22 = vector.broadcast %cst_7 : f32 to vector<8x256xf32>
    %c0_8 = arith.constant 0 : index
    %c0_9 = arith.constant 0 : index
    %c0_10 = arith.constant 0 : index
    %23 = vector.load %arg2[%c0_8, %c0_9, %c0_10] : memref<2x8x256xf32, #tpu.memory_space<vmem>>, vector<1x8x256xf32>
    %24 = vector.shape_cast %23 : vector<1x8x256xf32> to vector<8x256xf32>
    %25 = vector.shape_cast %22 : vector<8x256xf32> to vector<1x8x256xf32>
    tpu.vector_store %arg2[%c0_8, %c0_9, %c0_10], %25 {strides = array<i32>} : memref<2x8x256xf32, #tpu.memory_space<vmem>>, vector<1x8x256xf32>,
    %c1 = arith.constant 1 : index
    %c0_11 = arith.constant 0 : index
    %c0_12 = arith.constant 0 : index
    %26 = vector.load %arg2[%c1, %c0_11, %c0_12] : memref<2x8x256xf32, #tpu.memory_space<vmem>>, vector<1x8x256xf32>
    %27 = vector.shape_cast %26 : vector<1x8x256xf32> to vector<8x256xf32>
    %28 = vector.shape_cast %21 : vector<8x256xf32> to vector<1x8x256xf32>
    tpu.vector_store %arg2[%c1, %c0_11, %c0_12], %28 {strides = array<i32>} : memref<2x8x256xf32, #tpu.memory_space<vmem>>, vector<1x8x256xf32>,
    %c0_13 = arith.constant 0 : index
    %c0_14 = arith.constant 0 : index
    %c0_15 = arith.constant 0 : index
    %29 = vector.load %arg3[%c0_13, %c0_14, %c0_15] : memref<2x8x256xf32, #tpu.memory_space<vmem>>, vector<1x8x256xf32>
    %30 = vector.shape_cast %29 : vector<1x8x256xf32> to vector<8x256xf32>
    %31 = vector.shape_cast %7 : vector<8x256xf32> to vector<1x8x256xf32>
    tpu.vector_store %arg3[%c0_13, %c0_14, %c0_15], %31 {strides = array<i32>} : memref<2x8x256xf32, #tpu.memory_space<vmem>>, vector<1x8x256xf32>,
    %32 = arith.mulf %14, %21 : vector<8x256xf32>
    %c1_16 = arith.constant 1 : index
    %c0_17 = arith.constant 0 : index
    %c0_18 = arith.constant 0 : index
    %33 = vector.load %arg3[%c1_16, %c0_17, %c0_18] : memref<2x8x256xf32, #tpu.memory_space<vmem>>, vector<1x8x256xf32>
    %34 = vector.shape_cast %33 : vector<1x8x256xf32> to vector<8x256xf32>
    %35 = vector.shape_cast %32 : vector<8x256xf32> to vector<1x8x256xf32>
    tpu.vector_store %arg3[%c1_16, %c0_17, %c0_18], %35 {strides = array<i32>} : memref<2x8x256xf32, #tpu.memory_space<vmem>>, vector<1x8x256xf32>,
    %cst_19 = arith.constant dense<0.000000e+00> : vector<8xf32>
    %36 = vector.multi_reduction <add>, %21, %cst_19 [1] : vector<8x256xf32> to vector<8xf32>
    %37 = vector.shape_cast %36 : vector<8xf32> to vector<8x1xf32>
    %cst_20 = arith.constant 3.906250e-03 : f32
    %38 = vector.broadcast %cst_20 : f32 to vector<8x1xf32>
    %39 = arith.mulf %37, %38 : vector<8x1xf32>
    %40 = vector.shape_cast %39 : vector<8x1xf32> to vector<8x1xf32>
    %41 = vector.broadcast %40 : vector<8x1xf32> to vector<8x128xf32>
    %c0_21 = arith.constant 0 : index
    %c0_22 = arith.constant 0 : index
    %42 = vector.load %arg4[%c0_21, %c0_22] : memref<8x128xf32, #tpu.memory_space<vmem>>, vector<8x128xf32>
    tpu.vector_store %arg4[%c0_21, %c0_22], %41 {strides = array<i32>} : memref<8x128xf32, #tpu.memory_space<vmem>>, vector<8x128xf32>,
    return
  }
  func.func @transform_0(%arg0: i32) -> (i32, i32, i32) {
    %c0_i32 = arith.constant 0 : i32
    %c0_i32_0 = arith.constant 0 : i32
    %c0_i32_1 = arith.constant 0 : i32
    return %arg0, %c0_i32, %c0_i32_0 : i32, i32, i32
  }
  func.func @transform_1(%arg0: i32) -> (i32, i32, i32) {
    %c0_i32 = arith.constant 0 : i32
    %c0_i32_0 = arith.constant 0 : i32
    %c0_i32_1 = arith.constant 0 : i32
    return %c0_i32, %arg0, %c0_i32_0 : i32, i32, i32
  }
  func.func @transform_2(%arg0: i32) -> (i32, i32, i32) {
    %c0_i32 = arith.constant 0 : i32
    %c0_i32_0 = arith.constant 0 : i32
    %c0_i32_1 = arith.constant 0 : i32
    return %c0_i32, %arg0, %c0_i32_0 : i32, i32, i32
  }
  func.func @transform_3(%arg0: i32) -> (i32, i32) {
    %c0_i32 = arith.constant 0 : i32
    %c0_i32_0 = arith.constant 0 : i32
    return %arg0, %c0_i32 : i32, i32
  }
}

</mosaic_0001>

<llo_original>
// kernel: _comm_fused.1
$region0: #{_comm_fused.1}
  #allocation0 [shape = 'u32[]', space=smem, size = 0x4, offset = 0x4, fixed_abs, tag = 'smem constant byte address 0x4 - core index']
  #allocation1 [shape = 'u32[144,128]{1,0:T(1,128)}', space=vmem, size = 0x12000, scoped, tag = 'internal scratch']
  %s0 = inlined_call_operand.hbm [shape: f32[8,8,256], index: 0, kind: input, shape index: {}]
  %s1 = inlined_call_operand.hbm [shape: f32[2,8,256], index: 1, kind: output, shape index: {0}]
  %s2 = inlined_call_operand.hbm [shape: f32[2,8,256], index: 2, kind: output, shape index: {1}]
  %s3 = inlined_call_operand.hbm [shape: f32[8,128], index: 3, kind: output, shape index: {2}]
  %4 = xla_tuple %s1, %s2, %s3
  %s5 = sld [smem:[#allocation0]]
  $region34: #{_comm_fused.1} parent=0
    _
  %s7 = ssub.s32 1, %s5
  %s8 = scalar_select 0, %s7, %s5
  $region1: #{_comm_fused.1} parent=0
    #allocation2 [shape = 'u8[65536]{0}', space=vmem, size = 0x10000, scoped, tag = 'input window, operand 0, single buffered']
    #allocation3 [shape = 's32[1]{0}', space=sflag, size = 0x4, scoped, tag = 'scoped memory for _comm_fused.1']
    #allocation4 [shape = 's32[1]{0}', space=sflag, size = 0x4, scoped, tag = 'scoped memory for _comm_fused.1']
    #allocation5 [shape = 'u8[16384]{0}', space=vmem, size = 0x4000, scoped, tag = 'output window, operand 0, single buffered']
    #allocation6 [shape = 'u8[16384]{0}', space=vmem, size = 0x4000, scoped, tag = 'output window, operand 1, single buffered']
    #allocation7 [shape = 's32[1]{0}', space=sflag, size = 0x4, scoped, tag = 'scoped memory for _comm_fused.1']
    #allocation8 [shape = 'u8[4096]{0}', space=vmem, size = 0x1000, scoped, tag = 'output window, operand 2, single buffered']
    %9 = vsyncpa [#allocation3], 0
    %10 = vsyncpa [#allocation4], 0
    %11 = vsyncpa [#allocation7], 0
    // Predicated region
    $region2: #{_comm_fused.1} parent=1 // pred_check
      _
    $region3: #{_comm_fused.1} parent=1 // pred_check_branch
      %13 = sbr.rel (0) target = $region5
    $region4: #{_comm_fused.1} parent=1 // pred_region
      %s15 = ssub.s32 2048, 2048
      %16 = vsyncadd [#allocation3], %s15
      %s17 = sshll.u32 [#allocation2], 4
      %s18 = int_to_ptr.vmem [resolvable:$true] %s17
      %23 = dma.hbm_to_vmem [thread:$0]  %s0, 2048, %s18, [#allocation3], 256, 256, 16
    $region5: #{_comm_fused.1} parent=1 // pred_fallthru
      _
    // Predicated region
    $region6: #{_comm_fused.1} parent=1 // pred_check
      _
    $region7: #{_comm_fused.1} parent=1 // pred_check_branch
      %25 = sbr.rel (0) target = $region9
    $region8: #{_comm_fused.1} parent=1 // pred_region
      %26 = dma.done [#allocation3], 2048
    $region9: #{_comm_fused.1} parent=1 // pred_fallthru
      _
    %v27 = vld [vmem:[#allocation2] sm:$0xff]
    %v28 = vld [vmem:[#allocation2 + $0x8] sm:$0xff]
    %v29 = vld [vmem:[#allocation2 + $0x10] sm:$0xff]
    %v30 = vld [vmem:[#allocation2 + $0x18] sm:$0xff]
    %v31 = vld [vmem:[#allocation2 + $0x20] sm:$0xff]
    %v32 = vld [vmem:[#allocation2 + $0x28] sm:$0xff]
    %v33 = vld [vmem:[#allocation2 + $0x30] sm:$0xff]
    %v34 = vld [vmem:[#allocation2 + $0x38] sm:$0xff]
    %v35 = vld [vmem:[#allocation2 + $0x40] sm:$0xff]
    %v36 = vld [vmem:[#allocation2 + $0x48] sm:$0xff]
    %v37 = vld [vmem:[#allocation2 + $0x50] sm:$0xff]
    %v38 = vld [vmem:[#allocation2 + $0x58] sm:$0xff]
    %v39 = vld [vmem:[#allocation2 + $0x60] sm:$0xff]
    %v40 = vld [vmem:[#allocation2 + $0x68] sm:$0xff]
    %v41 = vld [vmem:[#allocation2 + $0x70] sm:$0xff]
    %v42 = vld [vmem:[#allocation2 + $0x78] sm:$0xff]
    %vm43 = vcmask 1043456
    %v44 = vsel %vm43, %v27, -inf
    %v45 = vrot.slane %v44, 4
    %v46 = vmax.f32 %v44, %v45
    %v47 = vrot.slane %v46, 2
    %v48 = vmax.f32 %v46, %v47
    %v49 = vrot.slane %v48, 1
    %v50 = vmax.f32 %v48, %v49
    %v51 = vsel %vm43, %v28, -inf
    %v52 = vrot.slane %v51, 4
    %v53 = vmax.f32 %v51, %v52
    %v54 = vrot.slane %v53, 2
    %v55 = vmax.f32 %v53, %v54
    %v56 = vrot.slane %v55, 1
    %v57 = vmax.f32 %v55, %v56
    %v58 = vsel %vm43, %v29, -inf
    %v59 = vrot.slane %v58, 4
    %v60 = vmax.f32 %v58, %v59
    %v61 = vrot.slane %v60, 2
    %v62 = vmax.f32 %v60, %v61
    %v63 = vrot.slane %v62, 1
    %v64 = vmax.f32 %v62, %v63
    %v65 = vsel %vm43, %v30, -inf
    %v66 = vrot.slane %v65, 4
    %v67 = vmax.f32 %v65, %v66
    %v68 = vrot.slane %v67, 2
    %v69 = vmax.f32 %v67, %v68
    %v70 = vrot.slane %v69, 1
    %v71 = vmax.f32 %v69, %v70
    %v72 = vsel %vm43, %v31, -inf
    %v73 = vrot.slane %v72, 4
    %v74 = vmax.f32 %v72, %v73
    %v75 = vrot.slane %v74, 2
    %v76 = vmax.f32 %v74, %v75
    %v77 = vrot.slane %v76, 1
    %v78 = vmax.f32 %v76, %v77
    %v79 = vsel %vm43, %v32, -inf
    %v80 = vrot.slane %v79, 4
    %v81 = vmax.f32 %v79, %v80
    %v82 = vrot.slane %v81, 2
    %v83 = vmax.f32 %v81, %v82
    %v84 = vrot.slane %v83, 1
    %v85 = vmax.f32 %v83, %v84
    %v86 = vsel %vm43, %v33, -inf
    %v87 = vrot.slane %v86, 4
    %v88 = vmax.f32 %v86, %v87
    %v89 = vrot.slane %v88, 2
    %v90 = vmax.f32 %v88, %v89
    %v91 = vrot.slane %v90, 1
    %v92 = vmax.f32 %v90, %v91
    %v93 = vsel %vm43, %v34, -inf
    %v94 = vrot.slane %v93, 4
    %v95 = vmax.f32 %v93, %v94
    %v96 = vrot.slane %v95, 2
    %v97 = vmax.f32 %v95, %v96
    %v98 = vrot.slane %v97, 1
    %v99 = vmax.f32 %v97, %v98
    %v100 = vsel %vm43, %v35, -inf
    %v101 = vrot.slane %v100, 4
    %v102 = vmax.f32 %v100, %v101
    %v103 = vrot.slane %v102, 2
    %v104 = vmax.f32 %v102, %v103
    %v105 = vrot.slane %v104, 1
    %v106 = vmax.f32 %v104, %v105
    %v107 = vsel %vm43, %v36, -inf
    %v108 = vrot.slane %v107, 4
    %v109 = vmax.f32 %v107, %v108
    %v110 = vrot.slane %v109, 2
    %v111 = vmax.f32 %v109, %v110
    %v112 = vrot.slane %v111, 1
    %v113 = vmax.f32 %v111, %v112
    %v114 = vsel %vm43, %v37, -inf
    %v115 = vrot.slane %v114, 4
    %v116 = vmax.f32 %v114, %v115
    %v117 = vrot.slane %v116, 2
    %v118 = vmax.f32 %v116, %v117
    %v119 = vrot.slane %v118, 1
    %v120 = vmax.f32 %v118, %v119
    %v121 = vsel %vm43, %v38, -inf
    %v122 = vrot.slane %v121, 4
    %v123 = vmax.f32 %v121, %v122
    %v124 = vrot.slane %v123, 2
    %v125 = vmax.f32 %v123, %v124
    %v126 = vrot.slane %v125, 1
    %v127 = vmax.f32 %v125, %v126
    %v128 = vsel %vm43, %v39, -inf
    %v129 = vrot.slane %v128, 4
    %v130 = vmax.f32 %v128, %v129
    %v131 = vrot.slane %v130, 2
    %v132 = vmax.f32 %v130, %v131
    %v133 = vrot.slane %v132, 1
    %v134 = vmax.f32 %v132, %v133
    %v135 = vsel %vm43, %v40, -inf
    %v136 = vrot.slane %v135, 4
    %v137 = vmax.f32 %v135, %v136
    %v138 = vrot.slane %v137, 2
    %v139 = vmax.f32 %v137, %v138
    %v140 = vrot.slane %v139, 1
    %v141 = vmax.f32 %v139, %v140
    %v142 = vsel %vm43, %v41, -inf
    %v143 = vrot.slane %v142, 4
    %v144 = vmax.f32 %v142, %v143
    %v145 = vrot.slane %v144, 2
    %v146 = vmax.f32 %v144, %v145
    %v147 = vrot.slane %v146, 1
    %v148 = vmax.f32 %v146, %v147
    %v149 = vsel %vm43, %v42, -inf
    %v150 = vrot.slane %v149, 4
    %v151 = vmax.f32 %v149, %v150
    %v152 = vrot.slane %v151, 2
    %v153 = vmax.f32 %v151, %v152
    %v154 = vrot.slane %v153, 1
    %v155 = vmax.f32 %v153, %v154
    %v156 = vxor.u32 %v50, 2147483648
    %v157 = vxor.u32 %v57, 2147483648
    %v158 = vxor.u32 %v64, 2147483648
    %v159 = vxor.u32 %v71, 2147483648
    %v160 = vxor.u32 %v78, 2147483648
    %v161 = vxor.u32 %v85, 2147483648
    %v162 = vxor.u32 %v92, 2147483648
    %v163 = vxor.u32 %v99, 2147483648
    %v164 = vxor.u32 %v106, 2147483648
    %v165 = vxor.u32 %v113, 2147483648
    %v166 = vxor.u32 %v120, 2147483648
    %v167 = vxor.u32 %v127, 2147483648
    %v168 = vxor.u32 %v134, 2147483648
    %v169 = vxor.u32 %v141, 2147483648
    %v170 = vxor.u32 %v148, 2147483648
    %v171 = vxor.u32 %v155, 2147483648
    %v172 = vmul.f32 %v156, 1.442695
    %v173 = vpow.pop %v172
    %v174 = vmul.f32 %v157, 1.442695
    %v175 = vpow.pop %v174
    %v176 = vmul.f32 %v158, 1.442695
    %v177 = vpow.pop %v176
    %v178 = vmul.f32 %v159, 1.442695
    %v179 = vpow.pop %v178
    %v180 = vmul.f32 %v160, 1.442695
    %v181 = vpow.pop %v180
    %v182 = vmul.f32 %v161, 1.442695
    %v183 = vpow.pop %v182
    %v184 = vmul.f32 %v162, 1.442695
    %v185 = vpow.pop %v184
    %v186 = vmul.f32 %v163, 1.442695
    %v187 = vpow.pop %v186
    %v188 = vmul.f32 %v164, 1.442695
    %v189 = vpow.pop %v188
    %v190 = vmul.f32 %v165, 1.442695
    %v191 = vpow.pop %v190
    %v192 = vmul.f32 %v166, 1.442695
    %v193 = vpow.pop %v192
    %v194 = vmul.f32 %v167, 1.442695
    %v195 = vpow.pop %v194
    %v196 = vmul.f32 %v168, 1.442695
    %v197 = vpow.pop %v196
    %v198 = vmul.f32 %v169, 1.442695
    %v199 = vpow.pop %v198
    %v200 = vmul.f32 %v170, 1.442695
    %v201 = vpow.pop %v200
    %v202 = vmul.f32 %v171, 1.442695
    %v203 = vpow.pop %v202
    %v204 = vadd.f32 %v173, 1.0
    %v205 = vadd.f32 %v175, 1.0
    %v206 = vadd.f32 %v177, 1.0
    %v207 = vadd.f32 %v179, 1.0
    %v208 = vadd.f32 %v181, 1.0
    %v209 = vadd.f32 %v183, 1.0
    %v210 = vadd.f32 %v185, 1.0
    %v211 = vadd.f32 %v187, 1.0
    %v212 = vadd.f32 %v189, 1.0
    %v213 = vadd.f32 %v191, 1.0
    %v214 = vadd.f32 %v193, 1.0
    %v215 = vadd.f32 %v195, 1.0
    %v216 = vadd.f32 %v197, 1.0
    %v217 = vadd.f32 %v199, 1.0
    %v218 = vadd.f32 %v201, 1.0
    %v219 = vadd.f32 %v203, 1.0
    %v220 = vrcp.pop %v204
    %v221 = vmul.f32 1.0, %v220
    %v222 = vrcp.pop %v205
    %v223 = vmul.f32 1.0, %v222
    %v224 = vrcp.pop %v206
    %v225 = vmul.f32 1.0, %v224
    %v226 = vrcp.pop %v207
    %v227 = vmul.f32 1.0, %v226
    %v228 = vrcp.pop %v208
    %v229 = vmul.f32 1.0, %v228
    %v230 = vrcp.pop %v209
    %v231 = vmul.f32 1.0, %v230
    %v232 = vrcp.pop %v210
    %v233 = vmul.f32 1.0, %v232
    %v234 = vrcp.pop %v211
    %v235 = vmul.f32 1.0, %v234
    %v236 = vrcp.pop %v212
    %v237 = vmul.f32 1.0, %v236
    %v238 = vrcp.pop %v213
    %v239 = vmul.f32 1.0, %v238
    %v240 = vrcp.pop %v214
    %v241 = vmul.f32 1.0, %v240
    %v242 = vrcp.pop %v215
    %v243 = vmul.f32 1.0, %v242
    %v244 = vrcp.pop %v216
    %v245 = vmul.f32 1.0, %v244
    %v246 = vrcp.pop %v217
    %v247 = vmul.f32 1.0, %v246
    %v248 = vrcp.pop %v218
    %v249 = vmul.f32 1.0, %v248
    %v250 = vrcp.pop %v219
    %v251 = vmul.f32 1.0, %v250
    %vm252 = vcmask 1047556
    %v253 = vsel %vm252, %v27, -inf
    %v254 = vrot.slane %v253, 4
    %v255 = vmax.f32 %v253, %v254
    %v256 = vrot.slane %v255, 2
    %v257 = vmax.f32 %v255, %v256
    %v258 = vrot.slane %v257, 1
    %v259 = vmax.f32 %v257, %v258
    %v260 = vsel %vm252, %v28, -inf
    %v261 = vrot.slane %v260, 4
    %v262 = vmax.f32 %v260, %v261
    %v263 = vrot.slane %v262, 2
    %v264 = vmax.f32 %v262, %v263
    %v265 = vrot.slane %v264, 1
    %v266 = vmax.f32 %v264, %v265
    %v267 = vsel %vm252, %v29, -inf
    %v268 = vrot.slane %v267, 4
    %v269 = vmax.f32 %v267, %v268
    %v270 = vrot.slane %v269, 2
    %v271 = vmax.f32 %v269, %v270
    %v272 = vrot.slane %v271, 1
    %v273 = vmax.f32 %v271, %v272
    %v274 = vsel %vm252, %v30, -inf
    %v275 = vrot.slane %v274, 4
    %v276 = vmax.f32 %v274, %v275
    %v277 = vrot.slane %v276, 2
    %v278 = vmax.f32 %v276, %v277
    %v279 = vrot.slane %v278, 1
    %v280 = vmax.f32 %v278, %v279
    %v281 = vsel %vm252, %v31, -inf
    %v282 = vrot.slane %v281, 4
    %v283 = vmax.f32 %v281, %v282
    %v284 = vrot.slane %v283, 2
    %v285 = vmax.f32 %v283, %v284
    %v286 = vrot.slane %v285, 1
    %v287 = vmax.f32 %v285, %v286
    %v288 = vsel %vm252, %v32, -inf
    %v289 = vrot.slane %v288, 4
    %v290 = vmax.f32 %v288, %v289
    %v291 = vrot.slane %v290, 2
    %v292 = vmax.f32 %v290, %v291
    %v293 = vrot.slane %v292, 1
    %v294 = vmax.f32 %v292, %v293
    %v295 = vsel %vm252, %v33, -inf
    %v296 = vrot.slane %v295, 4
    %v297 = vmax.f32 %v295, %v296
    %v298 = vrot.slane %v297, 2
    %v299 = vmax.f32 %v297, %v298
    %v300 = vrot.slane %v299, 1
    %v301 = vmax.f32 %v299, %v300
    %v302 = vsel %vm252, %v34, -inf
    %v303 = vrot.slane %v302, 4
    %v304 = vmax.f32 %v302, %v303
    %v305 = vrot.slane %v304, 2
    %v306 = vmax.f32 %v304, %v305
    %v307 = vrot.slane %v306, 1
    %v308 = vmax.f32 %v306, %v307
    %v309 = vsel %vm252, %v35, -inf
    %v310 = vrot.slane %v309, 4
    %v311 = vmax.f32 %v309, %v310
    %v312 = vrot.slane %v311, 2
    %v313 = vmax.f32 %v311, %v312
    %v314 = vrot.slane %v313, 1
    %v315 = vmax.f32 %v313, %v314
    %v316 = vsel %vm252, %v36, -inf
    %v317 = vrot.slane %v316, 4
    %v318 = vmax.f32 %v316, %v317
    %v319 = vrot.slane %v318, 2
    %v320 = vmax.f32 %v318, %v319
    %v321 = vrot.slane %v320, 1
    %v322 = vmax.f32 %v320, %v321
    %v323 = vsel %vm252, %v37, -inf
    %v324 = vrot.slane %v323, 4
    %v325 = vmax.f32 %v323, %v324
    %v326 = vrot.slane %v325, 2
    %v327 = vmax.f32 %v325, %v326
    %v328 = vrot.slane %v327, 1
    %v329 = vmax.f32 %v327, %v328
    %v330 = vsel %vm252, %v38, -inf
    %v331 = vrot.slane %v330, 4
    %v332 = vmax.f32 %v330, %v331
    %v333 = vrot.slane %v332, 2
    %v334 = vmax.f32 %v332, %v333
    %v335 = vrot.slane %v334, 1
    %v336 = vmax.f32 %v334, %v335
    %v337 = vsel %vm252, %v39, -inf
    %v338 = vrot.slane %v337, 4
    %v339 = vmax.f32 %v337, %v338
    %v340 = vrot.slane %v339, 2
    %v341 = vmax.f32 %v339, %v340
    %v342 = vrot.slane %v341, 1
    %v343 = vmax.f32 %v341, %v342
    %v344 = vsel %vm252, %v40, -inf
    %v345 = vrot.slane %v344, 4
    %v346 = vmax.f32 %v344, %v345
    %v347 = vrot.slane %v346, 2
    %v348 = vmax.f32 %v346, %v347
    %v349 = vrot.slane %v348, 1
    %v350 = vmax.f32 %v348, %v349
    %v351 = vsel %vm252, %v41, -inf
    %v352 = vrot.slane %v351, 4
    %v353 = vmax.f32 %v351, %v352
    %v354 = vrot.slane %v353, 2
    %v355 = vmax.f32 %v353, %v354
    %v356 = vrot.slane %v355, 1
    %v357 = vmax.f32 %v355, %v356
    %v358 = vsel %vm252, %v42, -inf
    %v359 = vrot.slane %v358, 4
    %v360 = vmax.f32 %v358, %v359
    %v361 = vrot.slane %v360, 2
    %v362 = vmax.f32 %v360, %v361
    %v363 = vrot.slane %v362, 1
    %v364 = vmax.f32 %v362, %v363
    %v365 = vxor.u32 %v259, 2147483648
    %v366 = vxor.u32 %v266, 2147483648
    %v367 = vxor.u32 %v273, 2147483648
    %v368 = vxor.u32 %v280, 2147483648
    %v369 = vxor.u32 %v287, 2147483648
    %v370 = vxor.u32 %v294, 2147483648
    %v371 = vxor.u32 %v301, 2147483648
    %v372 = vxor.u32 %v308, 2147483648
    %v373 = vxor.u32 %v315, 2147483648
    %v374 = vxor.u32 %v322, 2147483648
    %v375 = vxor.u32 %v329, 2147483648
    %v376 = vxor.u32 %v336, 2147483648
    %v377 = vxor.u32 %v343, 2147483648
    %v378 = vxor.u32 %v350, 2147483648
    %v379 = vxor.u32 %v357, 2147483648
    %v380 = vxor.u32 %v364, 2147483648
    %v381 = vmul.f32 %v365, 1.442695
    %v382 = vpow.pop %v381
    %v383 = vmul.f32 %v366, 1.442695
    %v384 = vpow.pop %v383
    %v385 = vmul.f32 %v367, 1.442695
    %v386 = vpow.pop %v385
    %v387 = vmul.f32 %v368, 1.442695
    %v388 = vpow.pop %v387
    %v389 = vmul.f32 %v369, 1.442695
    %v390 = vpow.pop %v389
    %v391 = vmul.f32 %v370, 1.442695
    %v392 = vpow.pop %v391
    %v393 = vmul.f32 %v371, 1.442695
    %v394 = vpow.pop %v393
    %v395 = vmul.f32 %v372, 1.442695
    %v396 = vpow.pop %v395
    %v397 = vmul.f32 %v373, 1.442695
    %v398 = vpow.pop %v397
    %v399 = vmul.f32 %v374, 1.442695
    %v400 = vpow.pop %v399
    %v401 = vmul.f32 %v375, 1.442695
    %v402 = vpow.pop %v401
    %v403 = vmul.f32 %v376, 1.442695
    %v404 = vpow.pop %v403
    %v405 = vmul.f32 %v377, 1.442695
    %v406 = vpow.pop %v405
    %v407 = vmul.f32 %v378, 1.442695
    %v408 = vpow.pop %v407
    %v409 = vmul.f32 %v379, 1.442695
    %v410 = vpow.pop %v409
    %v411 = vmul.f32 %v380, 1.442695
    %v412 = vpow.pop %v411
    %v413 = vadd.f32 %v382, 1.0
    %v414 = vadd.f32 %v384, 1.0
    %v415 = vadd.f32 %v386, 1.0
    %v416 = vadd.f32 %v388, 1.0
    %v417 = vadd.f32 %v390, 1.0
    %v418 = vadd.f32 %v392, 1.0
    %v419 = vadd.f32 %v394, 1.0
    %v420 = vadd.f32 %v396, 1.0
    %v421 = vadd.f32 %v398, 1.0
    %v422 = vadd.f32 %v400, 1.0
    %v423 = vadd.f32 %v402, 1.0
    %v424 = vadd.f32 %v404, 1.0
    %v425 = vadd.f32 %v406, 1.0
    %v426 = vadd.f32 %v408, 1.0
    %v427 = vadd.f32 %v410, 1.0
    %v428 = vadd.f32 %v412, 1.0
    %v429 = vrcp.pop %v413
    %v430 = vmul.f32 1.0, %v429
    %v431 = vrcp.pop %v414
    %v432 = vmul.f32 1.0, %v431
    %v433 = vrcp.pop %v415
    %v434 = vmul.f32 1.0, %v433
    %v435 = vrcp.pop %v416
    %v436 = vmul.f32 1.0, %v435
    %v437 = vrcp.pop %v417
    %v438 = vmul.f32 1.0, %v437
    %v439 = vrcp.pop %v418
    %v440 = vmul.f32 1.0, %v439
    %v441 = vrcp.pop %v419
    %v442 = vmul.f32 1.0, %v441
    %v443 = vrcp.pop %v420
    %v444 = vmul.f32 1.0, %v443
    %v445 = vrcp.pop %v421
    %v446 = vmul.f32 1.0, %v445
    %v447 = vrcp.pop %v422
    %v448 = vmul.f32 1.0, %v447
    %v449 = vrcp.pop %v423
    %v450 = vmul.f32 1.0, %v449
    %v451 = vrcp.pop %v424
    %v452 = vmul.f32 1.0, %v451
    %v453 = vrcp.pop %v425
    %v454 = vmul.f32 1.0, %v453
    %v455 = vrcp.pop %v426
    %v456 = vmul.f32 1.0, %v455
    %v457 = vrcp.pop %v427
    %v458 = vmul.f32 1.0, %v457
    %v459 = vrcp.pop %v428
    %v460 = vmul.f32 1.0, %v459
    %v461 = vsub.f32 1.0, %v221
    %v462 = vsub.f32 1.0, %v223
    %v463 = vsub.f32 1.0, %v225
    %v464 = vsub.f32 1.0, %v227
    %v465 = vsub.f32 1.0, %v229
    %v466 = vsub.f32 1.0, %v231
    %v467 = vsub.f32 1.0, %v233
    %v468 = vsub.f32 1.0, %v235
    %v469 = vsub.f32 1.0, %v237
    %v470 = vsub.f32 1.0, %v239
    %v471 = vsub.f32 1.0, %v241
    %v472 = vsub.f32 1.0, %v243
    %v473 = vsub.f32 1.0, %v245
    %v474 = vsub.f32 1.0, %v247
    %v475 = vsub.f32 1.0, %v249
    %v476 = vsub.f32 1.0, %v251
    %v477 = vmul.f32 %v461, %v430
    %v478 = vmul.f32 %v462, %v432
    %v479 = vmul.f32 %v463, %v434
    %v480 = vmul.f32 %v464, %v436
    %v481 = vmul.f32 %v465, %v438
    %v482 = vmul.f32 %v466, %v440
    %v483 = vmul.f32 %v467, %v442
    %v484 = vmul.f32 %v468, %v444
    %v485 = vmul.f32 %v469, %v446
    %v486 = vmul.f32 %v470, %v448
    %v487 = vmul.f32 %v471, %v450
    %v488 = vmul.f32 %v472, %v452
    %v489 = vmul.f32 %v473, %v454
    %v490 = vmul.f32 %v474, %v456
    %v491 = vmul.f32 %v475, %v458
    %v492 = vmul.f32 %v476, %v460
    %vm493 = vcmp.gt.f32.partialorder %v477, 0.02
    %vm494 = vcmp.gt.f32.partialorder %v478, 0.02
    %vm495 = vcmp.gt.f32.partialorder %v479, 0.02
    %vm496 = vcmp.gt.f32.partialorder %v480, 0.02
    %vm497 = vcmp.gt.f32.partialorder %v481, 0.02
    %vm498 = vcmp.gt.f32.partialorder %v482, 0.02
    %vm499 = vcmp.gt.f32.partialorder %v483, 0.02
    %vm500 = vcmp.gt.f32.partialorder %v484, 0.02
    %vm501 = vcmp.gt.f32.partialorder %v485, 0.02
    %vm502 = vcmp.gt.f32.partialorder %v486, 0.02
    %vm503 = vcmp.gt.f32.partialorder %v487, 0.02
    %vm504 = vcmp.gt.f32.partialorder %v488, 0.02
    %vm505 = vcmp.gt.f32.partialorder %v489, 0.02
    %vm506 = vcmp.gt.f32.partialorder %v490, 0.02
    %vm507 = vcmp.gt.f32.partialorder %v491, 0.02
    %vm508 = vcmp.gt.f32.partialorder %v492, 0.02
    %v509 = vsel %vm493, 1, 0
    %v510 = vsel %vm494, 1, 0
    %v511 = vsel %vm495, 1, 0
    %v512 = vsel %vm496, 1, 0
    %v513 = vsel %vm497, 1, 0
    %v514 = vsel %vm498, 1, 0
    %v515 = vsel %vm499, 1, 0
    %v516 = vsel %vm500, 1, 0
    %v517 = vsel %vm501, 1, 0
    %v518 = vsel %vm502, 1, 0
    %v519 = vsel %vm503, 1, 0
    %v520 = vsel %vm504, 1, 0
    %v521 = vsel %vm505, 1, 0
    %v522 = vsel %vm506, 1, 0
    %v523 = vsel %vm507, 1, 0
    %v524 = vsel %vm508, 1, 0
    %v525 = vcvt.s32.f32 %v509
    %v526 = vcvt.s32.f32 %v510
    %v527 = vcvt.s32.f32 %v511
    %v528 = vcvt.s32.f32 %v512
    %v529 = vcvt.s32.f32 %v513
    %v530 = vcvt.s32.f32 %v514
    %v531 = vcvt.s32.f32 %v515
    %v532 = vcvt.s32.f32 %v516
    %v533 = vcvt.s32.f32 %v517
    %v534 = vcvt.s32.f32 %v518
    %v535 = vcvt.s32.f32 %v519
    %v536 = vcvt.s32.f32 %v520
    %v537 = vcvt.s32.f32 %v521
    %v538 = vcvt.s32.f32 %v522
    %v539 = vcvt.s32.f32 %v523
    %v540 = vcvt.s32.f32 %v524
    %541 = vst [vmem:[#allocation5] sm:$0xff] 1.0
    %542 = vst [vmem:[#allocation5 + $0x8] sm:$0xff] 1.0
    %vm559 = vcmask 1041409
    %v560 = vsel %vm559, %v527, %v525
    %vm561 = vcmask 1042434
    %v562 = vsel %vm561, %v529, %v560
    %vm563 = vcmask 1043459
    %v564 = vsel %vm563, %v531, %v562
    %vm565 = vcmask 1044484
    %v566 = vsel %vm565, %v533, %v564
    %vm567 = vcmask 1045509
    %v568 = vsel %vm567, %v535, %v566
    %vm569 = vcmask 1046534
    %v570 = vsel %vm569, %v537, %v568
    %vm571 = vcmask 1047559
    %v572 = vsel %vm571, %v539, %v570
    %v573 = vsel %vm559, %v528, %v526
    %v574 = vsel %vm561, %v530, %v573
    %v575 = vsel %vm563, %v532, %v574
    %v576 = vsel %vm565, %v534, %v575
    %v577 = vsel %vm567, %v536, %v576
    %v578 = vsel %vm569, %v538, %v577
    %v579 = vsel %vm571, %v540, %v578
    %s582 = scalar_lea.vmem [#allocation5], 16
    %583 = vst [vmem:[%s582] sm:$0xff] %v572
    %584 = vst [vmem:[%s582 + $0x8] sm:$0xff] %v579
    %v601 = vsel %vm559, %v225, %v221
    %v602 = vsel %vm561, %v229, %v601
    %v603 = vsel %vm563, %v233, %v602
    %v604 = vsel %vm565, %v237, %v603
    %v605 = vsel %vm567, %v241, %v604
    %v606 = vsel %vm569, %v245, %v605
    %v607 = vsel %vm571, %v249, %v606
    %v608 = vsel %vm559, %v227, %v223
    %v609 = vsel %vm561, %v231, %v608
    %v610 = vsel %vm563, %v235, %v609
    %v611 = vsel %vm565, %v239, %v610
    %v612 = vsel %vm567, %v243, %v611
    %v613 = vsel %vm569, %v247, %v612
    %v614 = vsel %vm571, %v251, %v613
    %617 = vst [vmem:[#allocation6] sm:$0xff] %v607
    %618 = vst [vmem:[#allocation6 + $0x8] sm:$0xff] %v614
    %v619 = vmul.f32 %v430, %v525
    %v620 = vmul.f32 %v432, %v526
    %v621 = vmul.f32 %v434, %v527
    %v622 = vmul.f32 %v436, %v528
    %v623 = vmul.f32 %v438, %v529
    %v624 = vmul.f32 %v440, %v530
    %v625 = vmul.f32 %v442, %v531
    %v626 = vmul.f32 %v444, %v532
    %v627 = vmul.f32 %v446, %v533
    %v628 = vmul.f32 %v448, %v534
    %v629 = vmul.f32 %v450, %v535
    %v630 = vmul.f32 %v452, %v536
    %v631 = vmul.f32 %v454, %v537
    %v632 = vmul.f32 %v456, %v538
    %v633 = vmul.f32 %v458, %v539
    %v634 = vmul.f32 %v460, %v540
    %v651 = vsel %vm559, %v621, %v619
    %v652 = vsel %vm561, %v623, %v651
    %v653 = vsel %vm563, %v625, %v652
    %v654 = vsel %vm565, %v627, %v653
    %v655 = vsel %vm567, %v629, %v654
    %v656 = vsel %vm569, %v631, %v655
    %v657 = vsel %vm571, %v633, %v656
    %v658 = vsel %vm559, %v622, %v620
    %v659 = vsel %vm561, %v624, %v658
    %v660 = vsel %vm563, %v626, %v659
    %v661 = vsel %vm565, %v628, %v660
    %v662 = vsel %vm567, %v630, %v661
    %v663 = vsel %vm569, %v632, %v662
    %v664 = vsel %vm571, %v634, %v663
    %s667 = scalar_lea.vmem [#allocation6], 16
    %668 = vst [vmem:[%s667] sm:$0xff] %v657
    %669 = vst [vmem:[%s667 + $0x8] sm:$0xff] %v664
    %v670 = vadd.f32 %v572, %v579
    %671 = vadd.xlane.f32.xlu0 %v670
    %v672 = vpop.xlane.xlu0 %671
    %v673 = vmul.f32 %v672, 0.00390625
    %674 = vst [vmem:[#allocation8] sm:$0xff] %v673
    // Predicated region
    $region10: #{_comm_fused.1} parent=1 // pred_check
      _
    $region11: #{_comm_fused.1} parent=1 // pred_check_branch
      %676 = sbr.rel (0) target = $region13
    $region12: #{_comm_fused.1} parent=1 // pred_region
      %s678 = ssub.s32 512, 512
      %679 = vsyncadd [#allocation4], %s678
      %s680 = sshll.u32 [#allocation5], 4
      %s681 = int_to_ptr.vmem [resolvable:$true] %s680
      %686 = dma.vmem_to_hbm [thread:$0]  %s681, 512, %s1, [#allocation4], 256, 256, 16
    $region13: #{_comm_fused.1} parent=1 // pred_fallthru
      _
    // Predicated region
    $region14: #{_comm_fused.1} parent=1 // pred_check
      _
    $region15: #{_comm_fused.1} parent=1 // pred_check_branch
      %688 = sbr.rel (0) target = $region17
    $region16: #{_comm_fused.1} parent=1 // pred_region
      %s690 = ssub.s32 512, 512
      %691 = vsyncadd [#allocation7], %s690
      %s692 = sshll.u32 [#allocation6], 4
      %s693 = int_to_ptr.vmem [resolvable:$true] %s692
      %698 = dma.vmem_to_hbm [thread:$0]  %s693, 512, %s2, [#allocation7], 256, 256, 16
    $region17: #{_comm_fused.1} parent=1 // pred_fallthru
      _
    // Predicated region
    $region18: #{_comm_fused.1} parent=1 // pred_check
      _
    $region19: #{_comm_fused.1} parent=1 // pred_check_branch
      %700 = sbr.rel (0) target = $region21
    $region20: #{_comm_fused.1} parent=1 // pred_region
      %s702 = ssub.s32 128, 128
      %703 = vsyncadd [#allocation7], %s702
      %s705 = sshll.u32 [#allocation8], 4
      %s706 = int_to_ptr.vmem [resolvable:$true] %s705
      %708 = dma.vmem_to_hbm [thread:$0]  %s706, 128, %s3, [#allocation7]
    $region21: #{_comm_fused.1} parent=1 // pred_fallthru
      _
    // Predicated region
    $region22: #{_comm_fused.1} parent=1 // pred_check
      _
    $region23: #{_comm_fused.1} parent=1 // pred_check_branch
      %710 = sbr.rel (0) target = $region25
    $region24: #{_comm_fused.1} parent=1 // pred_region
      %711 = dma.done [#allocation4], 512
    $region25: #{_comm_fused.1} parent=1 // pred_fallthru
      _
    // Predicated region
    $region26: #{_comm_fused.1} parent=1 // pred_check
      _
    $region27: #{_comm_fused.1} parent=1 // pred_check_branch
      %713 = sbr.rel (0) target = $region29
    $region28: #{_comm_fused.1} parent=1 // pred_region
      %714 = dma.done [#allocation7], 512
    $region29: #{_comm_fused.1} parent=1 // pred_fallthru
      _
    // Predicated region
    $region30: #{_comm_fused.1} parent=1 // pred_check
      _
    $region31: #{_comm_fused.1} parent=1 // pred_check_branch
      %716 = sbr.rel (0) target = $region33
    $region32: #{_comm_fused.1} parent=1 // pred_region
      %717 = dma.done [#allocation7], 128
    $region33: #{_comm_fused.1} parent=1 // pred_fallthru
      _
    %718 = vsyncpa [#allocation3], 1
    %719 = vsyncpa [#allocation4], 1
    %720 = vsyncpa [#allocation7], 1

</llo_original>
